<compile_context>
chip_gen: v7x
topology: tpu7x:2x2x1
jax: 0.10.0
libtpu: 0.0.40
codegen_flags: <defaults>
</compile_context>

<pallas_src>
import math

import jax
import jax.numpy as jnp
from jax.experimental import pallas as pl
from jax.experimental.pallas import tpu as pltpu


def _attention_kernel(enc_ref, hid_ref, w1e_ref, w1h_ref, b1_ref, w2_ref,
                      ctx_ref):
    """One batch row per grid step.

    Refs (per grid step b):
      enc_ref : (1, S, D)  encoder outputs for batch row b
      hid_ref : (1, 1, D)  decoder hidden state for batch row b
      w1e_ref : (D, D)     W1[:, :D]^T   (encoder half of linear1, transposed)
      w1h_ref : (D, D)     W1[:, D:]^T   (hidden  half of linear1, transposed)
      b1_ref  : (1, D)     linear1 bias
      w2_ref  : (1, D)     linear2 weight (no bias)
      ctx_ref : (1, 1, D)  context vector output for batch row b
    """
    enc = enc_ref[0].astype(jnp.float32)          # (S, D)
    hid = hid_ref[0].astype(jnp.float32)          # (1, D)

    # linear1 applied to concat(enc, hid) == enc @ W1e^T + hid @ W1h^T + b1
    enc_proj = jnp.dot(enc, w1e_ref[...], preferred_element_type=jnp.float32)   # (S, D)
    hid_proj = jnp.dot(hid, w1h_ref[...], preferred_element_type=jnp.float32)   # (1, D)
    t = jnp.tanh(enc_proj + hid_proj + b1_ref[...])                              # (S, D)

    # linear2 (dim -> 1, no bias): lane-reduce instead of a degenerate N=1 matmul
    e = jnp.sum(t * w2_ref[...], axis=-1, keepdims=True)                          # (S, 1)

    # softmax over the sequence axis
    m = jnp.max(e, axis=0, keepdims=True)                                          # (1, 1)
    p = jnp.exp(e - m)                                                             # (S, 1)
    denom = jnp.sum(p, axis=0, keepdims=True)                                      # (1, 1)
    alpha = p / denom                                                              # (S, 1)

    # context = sum_s alpha[s] * enc[s, :]
    ctx = jnp.sum(alpha * enc, axis=0, keepdims=True)                              # (1, D)
    ctx_ref[0] = ctx.astype(ctx_ref.dtype)


def attention_forward(hidden_state, encoder_outputs, w1e_t, w1h_t, b1_row,
                      w2_row):
    """hidden_state: (B, D), encoder_outputs: (B, S, D) -> context (B, D)."""
    B, S, D = encoder_outputs.shape
    hid3 = hidden_state.reshape(B, 1, D)

    ctx3 = pl.pallas_call(
        _attention_kernel,
        out_shape=jax.ShapeDtypeStruct((B, 1, D), encoder_outputs.dtype),
        grid_spec=pltpu.PrefetchScalarGridSpec(
            num_scalar_prefetch=0,
            grid=(B,),
            in_specs=[
                pl.BlockSpec((1, S, D), lambda b: (b, 0, 0)),   # encoder outputs
                pl.BlockSpec((1, 1, D), lambda b: (b, 0, 0)),   # hidden state
                pl.BlockSpec((D, D), lambda b: (0, 0)),         # W1 encoder half^T
                pl.BlockSpec((D, D), lambda b: (0, 0)),         # W1 hidden half^T
                pl.BlockSpec((1, D), lambda b: (0, 0)),         # b1
                pl.BlockSpec((1, D), lambda b: (0, 0)),         # w2
            ],
            out_specs=pl.BlockSpec((1, 1, D), lambda b: (b, 0, 0)),
        ),
        compiler_params=pltpu.CompilerParams(
            dimension_semantics=("parallel",)),   # batch rows are independent
    )(encoder_outputs, hid3, w1e_t, w1h_t, b1_row, w2_row)

    return ctx3.reshape(B, D)


class AttentionPallas:
    """Pallas port of the PyTorch Attention module (inference forward pass)."""

    def __init__(self, dim, key=None):
        self.dim = dim
        if key is None:
            key = jax.random.PRNGKey(0)
        k1, k2, k3 = jax.random.split(key, 3)

        # nn.Linear default init: U(-1/sqrt(fan_in), 1/sqrt(fan_in))
        bound1 = 1.0 / math.sqrt(2 * dim)
        self.w1 = jax.random.uniform(k1, (dim, 2 * dim), jnp.float32,
                                     -bound1, bound1)     # linear1.weight
        self.b1 = jax.random.uniform(k2, (dim,), jnp.float32,
                                     -bound1, bound1)     # linear1.bias
        bound2 = 1.0 / math.sqrt(dim)
        self.w2 = jax.random.uniform(k3, (1, dim), jnp.float32,
                                     -bound2, bound2)     # linear2.weight

        # Hoisted weight prep (done once, not per forward call):
        self.w1e_t = jnp.transpose(self.w1[:, :dim])       # (D, D) encoder half
        self.w1h_t = jnp.transpose(self.w1[:, dim:])       # (D, D) hidden half
        self.b1_row = self.b1.reshape(1, dim)
        self.w2_row = self.w2.reshape(1, dim)

    def __call__(self, hidden_state, encoder_outputs):
        """hidden_state: (B, dim), encoder_outputs: (B, S, dim) -> (B, dim)."""
        return attention_forward(hidden_state, encoder_outputs,
                                 self.w1e_t, self.w1h_t, self.b1_row,
                                 self.w2_row)


def _attention_reference(hidden_state, encoder_outputs, w1, b1, w2):
    """Pure-JAX reference mirroring the PyTorch forward exactly."""
    B, S, D = encoder_outputs.shape
    hid = jnp.broadcast_to(hidden_state[:, None, :], (B, S, D))
    inputs = jnp.concatenate([encoder_outputs, hid], axis=2).reshape(-1, 2 * D)
    o = jnp.dot(jnp.tanh(jnp.dot(inputs, w1.T) + b1), w2.T)   # (B*S, 1)
    e = o.reshape(B, S)
    alpha = jax.nn.softmax(e, axis=1)
    context = jnp.einsum("bs,bsd->bd", alpha, encoder_outputs)
    return context


if __name__ == "__main__":
    B, S, DIM = 2, 8, 32

    root = jax.random.PRNGKey(0)
    k_param, k_h, k_enc = jax.random.split(root, 3)

    attn = AttentionPallas(DIM, key=k_param)

    hidden_state = jax.random.normal(k_h, (B, DIM), jnp.float32)
    encoder_outputs = jax.random.normal(k_enc, (B, S, DIM), jnp.float32)

    context = attn(hidden_state, encoder_outputs)
    jax.block_until_ready(context)
    assert context.shape == (B, DIM)

    ref = _attention_reference(hidden_state, encoder_outputs,
                               attn.w1, attn.b1, attn.w2)
    assert jnp.allclose(context, ref, rtol=2e-2, atol=2e-2), \
        float(jnp.max(jnp.abs(context - ref)))

    print("KERNEL_OK")
</pallas_src>

<mosaic_0001>
module attributes {stable_mosaic.version = 11 : i64} {
  func.func @_attention_kernel(%arg0: i32, %arg1: memref<1x8x32xf32, #tpu.memory_space<vmem>>, %arg2: memref<1x1x32xf32, #tpu.memory_space<vmem>>, %arg3: memref<32x32xf32, #tpu.memory_space<vmem>>, %arg4: memref<32x32xf32, #tpu.memory_space<vmem>>, %arg5: memref<1x32xf32, #tpu.memory_space<vmem>>, %arg6: memref<1x32xf32, #tpu.memory_space<vmem>>, %arg7: memref<1x1x32xf32, #tpu.memory_space<vmem>>) attributes {dimension_semantics = [#tpu.dimension_semantics<parallel>], iteration_bounds = array<i64: 2>, scalar_prefetch = 0 : i64, scratch_operands = 0 : i64, tpu.core_type = #tpu.core_type<tc>, window_params = [{transform_indices = @transform_0, window_bounds = array<i64: 1, 8, 32>}, {transform_indices = @transform_1, window_bounds = array<i64: 1, 1, 32>}, {pipeline_mode = #tpu.pipeline_mode<synchronous>, transform_indices = @transform_2, window_bounds = array<i64: 32, 32>}, {pipeline_mode = #tpu.pipeline_mode<synchronous>, transform_indices = @transform_3, window_bounds = array<i64: 32, 32>}, {pipeline_mode = #tpu.pipeline_mode<synchronous>, transform_indices = @transform_4, window_bounds = array<i64: 1, 32>}, {pipeline_mode = #tpu.pipeline_mode<synchronous>, transform_indices = @transform_5, window_bounds = array<i64: 1, 32>}, {transform_indices = @transform_6, window_bounds = array<i64: 1, 1, 32>}]} {
    %c0 = arith.constant 0 : index
    %c0_0 = arith.constant 0 : index
    %c0_1 = arith.constant 0 : index
    %0 = vector.load %arg1[%c0, %c0_0, %c0_1] : memref<1x8x32xf32, #tpu.memory_space<vmem>>, vector<1x8x32xf32>
    %1 = vector.shape_cast %0 : vector<1x8x32xf32> to vector<8x32xf32>
    %c0_2 = arith.constant 0 : index
    %c0_3 = arith.constant 0 : index
    %c0_4 = arith.constant 0 : index
    %2 = vector.load %arg2[%c0_2, %c0_3, %c0_4] : memref<1x1x32xf32, #tpu.memory_space<vmem>>, vector<1x1x32xf32>
    %3 = vector.shape_cast %2 : vector<1x1x32xf32> to vector<1x32xf32>
    %c0_5 = arith.constant 0 : index
    %c0_6 = arith.constant 0 : index
    %4 = vector.load %arg3[%c0_5, %c0_6] : memref<32x32xf32, #tpu.memory_space<vmem>>, vector<32x32xf32>
    %cst = arith.constant dense<0.000000e+00> : vector<8x32xf32>
    %5 = tpu.matmul %1, %4, %cst {dimension_numbers = #tpu.dot_dimension_numbers<[1], [0], [0], [1], [0, 0, 1, 1], [], []>} : vector<8x32xf32>, vector<32x32xf32>, vector<8x32xf32> -> vector<8x32xf32>
    %c0_7 = arith.constant 0 : index
    %c0_8 = arith.constant 0 : index
    %6 = vector.load %arg4[%c0_7, %c0_8] : memref<32x32xf32, #tpu.memory_space<vmem>>, vector<32x32xf32>
    %cst_9 = arith.constant dense<0.000000e+00> : vector<1x32xf32>
    %7 = tpu.matmul %3, %6, %cst_9 {dimension_numbers = #tpu.dot_dimension_numbers<[1], [0], [0], [1], [0, 0, 1, 1], [], []>} : vector<1x32xf32>, vector<32x32xf32>, vector<1x32xf32> -> vector<1x32xf32>
    %8 = vector.broadcast %7 : vector<1x32xf32> to vector<8x32xf32>
    %9 = arith.addf %5, %8 : vector<8x32xf32>
    %c0_10 = arith.constant 0 : index
    %c0_11 = arith.constant 0 : index
    %10 = vector.load %arg5[%c0_10, %c0_11] : memref<1x32xf32, #tpu.memory_space<vmem>>, vector<1x32xf32>
    %11 = vector.broadcast %10 : vector<1x32xf32> to vector<8x32xf32>
    %12 = arith.addf %9, %11 : vector<8x32xf32>
    %13 = math.tanh %12 : vector<8x32xf32>
    %c0_12 = arith.constant 0 : index
    %c0_13 = arith.constant 0 : index
    %14 = vector.load %arg6[%c0_12, %c0_13] : memref<1x32xf32, #tpu.memory_space<vmem>>, vector<1x32xf32>
    %15 = vector.broadcast %14 : vector<1x32xf32> to vector<8x32xf32>
    %16 = arith.mulf %13, %15 : vector<8x32xf32>
    %cst_14 = arith.constant dense<0.000000e+00> : vector<8xf32>
    %17 = vector.multi_reduction <add>, %16, %cst_14 [1] : vector<8x32xf32> to vector<8xf32>
    %18 = vector.shape_cast %17 : vector<8xf32> to vector<8x1xf32>
    %cst_15 = arith.constant dense<0xFF800000> : vector<1xf32>
    %19 = vector.multi_reduction <maximumf>, %18, %cst_15 [0] : vector<8x1xf32> to vector<1xf32>
    %20 = vector.shape_cast %19 : vector<1xf32> to vector<1x1xf32>
    %21 = vector.broadcast %20 : vector<1x1xf32> to vector<8x1xf32>
    %22 = arith.subf %18, %21 : vector<8x1xf32>
    %23 = math.exp %22 : vector<8x1xf32>
    %cst_16 = arith.constant dense<0.000000e+00> : vector<1xf32>
    %24 = vector.multi_reduction <add>, %23, %cst_16 [0] : vector<8x1xf32> to vector<1xf32>
    %25 = vector.shape_cast %24 : vector<1xf32> to vector<1x1xf32>
    %26 = vector.broadcast %25 : vector<1x1xf32> to vector<8x1xf32>
    %27 = arith.divf %23, %26 : vector<8x1xf32>
    %28 = vector.broadcast %27 : vector<8x1xf32> to vector<8x32xf32>
    %29 = arith.mulf %28, %1 : vector<8x32xf32>
    %cst_17 = arith.constant dense<0.000000e+00> : vector<32xf32>
    %30 = vector.multi_reduction <add>, %29, %cst_17 [0] : vector<8x32xf32> to vector<32xf32>
    %31 = vector.shape_cast %30 : vector<32xf32> to vector<1x32xf32>
    %c0_18 = arith.constant 0 : index
    %c0_19 = arith.constant 0 : index
    %c0_20 = arith.constant 0 : index
    %32 = vector.load %arg7[%c0_18, %c0_19, %c0_20] : memref<1x1x32xf32, #tpu.memory_space<vmem>>, vector<1x1x32xf32>
    %33 = vector.shape_cast %32 : vector<1x1x32xf32> to vector<1x32xf32>
    %34 = vector.shape_cast %31 : vector<1x32xf32> to vector<1x1x32xf32>
    tpu.vector_store %arg7[%c0_18, %c0_19, %c0_20], %34 {strides = array<i32>} : memref<1x1x32xf32, #tpu.memory_space<vmem>>, vector<1x1x32xf32>,
    return
  }
  func.func @transform_0(%arg0: i32) -> (i32, i32, i32) {
    %c0_i32 = arith.constant 0 : i32
    %c0_i32_0 = arith.constant 0 : i32
    %c0_i32_1 = arith.constant 0 : i32
    return %arg0, %c0_i32, %c0_i32_0 : i32, i32, i32
  }
  func.func @transform_1(%arg0: i32) -> (i32, i32, i32) {
    %c0_i32 = arith.constant 0 : i32
    %c0_i32_0 = arith.constant 0 : i32
    %c0_i32_1 = arith.constant 0 : i32
    return %arg0, %c0_i32, %c0_i32_0 : i32, i32, i32
  }
  func.func @transform_2(%arg0: i32) -> (i32, i32) {
    %c0_i32 = arith.constant 0 : i32
    %c0_i32_0 = arith.constant 0 : i32
    %c0_i32_1 = arith.constant 0 : i32
    return %c0_i32, %c0_i32_0 : i32, i32
  }
  func.func @transform_3(%arg0: i32) -> (i32, i32) {
    %c0_i32 = arith.constant 0 : i32
    %c0_i32_0 = arith.constant 0 : i32
    %c0_i32_1 = arith.constant 0 : i32
    return %c0_i32, %c0_i32_0 : i32, i32
  }
  func.func @transform_4(%arg0: i32) -> (i32, i32) {
    %c0_i32 = arith.constant 0 : i32
    %c0_i32_0 = arith.constant 0 : i32
    %c0_i32_1 = arith.constant 0 : i32
    return %c0_i32, %c0_i32_0 : i32, i32
  }
  func.func @transform_5(%arg0: i32) -> (i32, i32) {
    %c0_i32 = arith.constant 0 : i32
    %c0_i32_0 = arith.constant 0 : i32
    %c0_i32_1 = arith.constant 0 : i32
    return %c0_i32, %c0_i32_0 : i32, i32
  }
  func.func @transform_6(%arg0: i32) -> (i32, i32, i32) {
    %c0_i32 = arith.constant 0 : i32
    %c0_i32_0 = arith.constant 0 : i32
    %c0_i32_1 = arith.constant 0 : i32
    return %arg0, %c0_i32, %c0_i32_0 : i32, i32, i32
  }
}

</mosaic_0001>

<llo_original>
// kernel: tpu_custom_call.1
$region0: #{tpu_custom_call.1}
  #allocation0 [shape = 'u32[]', space=smem, size = 0x4, offset = 0x4, fixed_abs, tag = 'smem constant byte address 0x4 - core index']
  #allocation1 [shape = 'u32[144,128]{1,0:T(1,128)}', space=vmem, size = 0x12000, scoped, tag = 'internal scratch']
  %s0 = inlined_call_operand.hbm [shape: f32[2,8,32], index: 0, kind: input, shape index: {}]
  %s1 = inlined_call_operand.vmem [shape: f32[2,1,32], index: 1, kind: input, shape index: {}]
  %s2 = inlined_call_operand.hbm [shape: f32[32,32], index: 2, kind: input, shape index: {}]
  %s3 = inlined_call_operand.hbm [shape: f32[32,32], index: 3, kind: input, shape index: {}]
  %s4 = inlined_call_operand.vmem [shape: f32[1,32], index: 4, kind: input, shape index: {}]
  %s5 = inlined_call_operand.vmem [shape: f32[1,32], index: 5, kind: input, shape index: {}]
  %s6 = inlined_call_operand.hbm [shape: f32[2,1,32], index: 6, kind: output, shape index: {}]
  %s7 = sld [smem:[#allocation0]]
  $region69: #{tpu_custom_call.1} parent=0
    _
  %s9 = ssub.s32 1, %s7
  %s10 = scalar_select 0, %s9, %s7
  $region1: #{tpu_custom_call.1} parent=0
    #allocation2 [shape = 'u8[8192]{0}', space=vmem, size = 0x2000, scoped, tag = 'input window, operand 0']
    #allocation3 [shape = 's32[2]{0}', space=sflag, size = 0x8, scoped, tag = 'scoped memory for tpu_custom_call.1']
    #allocation4 [shape = 's32[2]{0}', space=sflag, size = 0x8, scoped, tag = 'scoped memory for tpu_custom_call.1']
    #allocation5 [shape = 'u8[16384]{0}', space=vmem, size = 0x4000, scoped, tag = 'input window, operand 2, single buffered']
    #allocation6 [shape = 's32[1]{0}', space=sflag, size = 0x4, scoped, tag = 'scoped memory for tpu_custom_call.1']
    #allocation7 [shape = 'u8[16384]{0}', space=vmem, size = 0x4000, scoped, tag = 'input window, operand 3, single buffered']
    #allocation8 [shape = 'u8[1024]{0}', space=vmem, size = 0x400, scoped, tag = 'output window, operand 0']
    %11 = vsyncpa [#allocation3], 0
    %s12 = scalar_lea.sflag [#allocation3], 1
    %13 = vsyncpa %s12, 0
    %14 = vsyncpa [#allocation6], 0
    %15 = vsyncpa [#allocation4], 0
    %s16 = scalar_lea.sflag [#allocation4], 1
    %17 = vsyncpa %s16, 0
    loop: start=0, step=1, limit=4
    $region2: #{tpu_custom_call.1} parent=1 // loop_pre_header
      _
    $region3: #{tpu_custom_call.1} parent=1 // loop_header
      %s19 = sphi 0, %s23
      %p20 = scmp.ge.s32.totalorder %s19, 4
      %s29 = sphi 0, %s31
      %s32 = sphi 0, %s29
      %s33 = sphi 0, %s32
      %s49 = sphi 0, %s33
      %s55 = sphi 0, %s57
      %s58 = sphi 0, %s55
      %s59 = sphi 0, %s58
      %s75 = sphi 0, %s59
      %s79 = sphi 0, %s79
      %s81 = sphi 0, %s79
      %s82 = sphi 0, %s81
      %s96 = sphi 0, %s82
      %s100 = sphi 0, %s100
      %s102 = sphi 0, %s100
      %s103 = sphi 0, %s102
      %s117 = sphi 0, %s103
      %s121 = sphi 0, %s121
      %s123 = sphi 0, %s121
      %s124 = sphi 0, %s123
      %s138 = sphi 0, %s124
      %s142 = sphi 0, %s142
      %s144 = sphi 0, %s142
      %s145 = sphi 0, %s144
      %s159 = sphi 0, %s145
      %s165 = sphi 0, %s167
      %s168 = sphi 0, %s165
      %s169 = sphi 0, %s168
      %s185 = sphi 0, %s169
    $region4: #{tpu_custom_call.1} parent=1 // loop_header_branch
      %22 = sbr.rel (%p20) target = $region8
    $region5: #{tpu_custom_call.1} parent=1 // loop_body
      %s24 = ssub.s32 %s19, 1
      %s25 = ssub.s32 %s19, 2
      %s26 = sadd.s32 %s19, 1
      %s27 = ssub.s32 %s19, %s26
      %p28 = scmp.eq.s32.totalorder %s27, 0
      %s30 = sadd.s32 %s29, 1
      %s31 = scalar_select %p28, %s29, %s30
      %p34 = pneg %p28
      %p35 = scmp.eq.s32.totalorder %s19, 1
      %p36 = por %p34, %p35
      %p37 = scmp.ne.s32.totalorder %s29, %s32
      %p38 = scmp.eq.s32.totalorder %s19, 0
      %p39 = por %p37, %p38
      %p40 = scmp.ne.s32.totalorder %s29, %s32
      %p41 = scmp.eq.s32.totalorder %s24, 1
      %p42 = por %p40, %p41
      %p43 = scmp.ne.s32.totalorder %s32, %s33
      %p44 = scmp.eq.s32.totalorder %s24, 0
      %p45 = por %p43, %p44
      %p46 = scmp.ne.s32.totalorder %s32, %s33
      %p47 = scmp.eq.s32.totalorder %s25, 1
      %p48 = por %p46, %p47
      %p50 = scmp.ne.s32.totalorder %s33, %s49
      %p51 = scmp.eq.s32.totalorder %s25, 0
      %p52 = por %p50, %p51
      %s53 = ssub.s32 %s19, %s26
      %p54 = scmp.eq.s32.totalorder %s53, 0
      %s56 = sadd.s32 %s55, 1
      %s57 = scalar_select %p54, %s55, %s56
      %p60 = pneg %p54
      %p61 = scmp.eq.s32.totalorder %s19, 1
      %p62 = por %p60, %p61
      %p63 = scmp.ne.s32.totalorder %s55, %s58
      %p64 = scmp.eq.s32.totalorder %s19, 0
      %p65 = por %p63, %p64
      %p66 = scmp.ne.s32.totalorder %s55, %s58
      %p67 = scmp.eq.s32.totalorder %s24, 1
      %p68 = por %p66, %p67
      %p69 = scmp.ne.s32.totalorder %s58, %s59
      %p70 = scmp.eq.s32.totalorder %s24, 0
      %p71 = por %p69, %p70
      %p72 = scmp.ne.s32.totalorder %s58, %s59
      %p73 = scmp.eq.s32.totalorder %s25, 1
      %p74 = por %p72, %p73
      %p76 = scmp.ne.s32.totalorder %s59, %s75
      %p77 = scmp.eq.s32.totalorder %s25, 0
      %p78 = por %p76, %p77
      %s80 = sadd.s32 %s79, 1
      %p83 = scmp.eq.s32.totalorder %s19, 1
      %p84 = scmp.ne.s32.totalorder %s79, %s81
      %p85 = scmp.eq.s32.totalorder %s19, 0
      %p86 = por %p84, %p85
      %p87 = scmp.ne.s32.totalorder %s79, %s81
      %p88 = scmp.eq.s32.totalorder %s24, 1
      %p89 = por %p87, %p88
      %p90 = scmp.ne.s32.totalorder %s81, %s82
      %p91 = scmp.eq.s32.totalorder %s24, 0
      %p92 = por %p90, %p91
      %p93 = scmp.ne.s32.totalorder %s81, %s82
      %p94 = scmp.eq.s32.totalorder %s25, 1
      %p95 = por %p93, %p94
      %p97 = scmp.ne.s32.totalorder %s82, %s96
      %p98 = scmp.eq.s32.totalorder %s25, 0
      %p99 = por %p97, %p98
      %s101 = sadd.s32 %s100, 1
      %p104 = scmp.eq.s32.totalorder %s19, 1
      %p105 = scmp.ne.s32.totalorder %s100, %s102
      %p106 = scmp.eq.s32.totalorder %s19, 0
      %p107 = por %p105, %p106
      %p108 = scmp.ne.s32.totalorder %s100, %s102
      %p109 = scmp.eq.s32.totalorder %s24, 1
      %p110 = por %p108, %p109
      %p111 = scmp.ne.s32.totalorder %s102, %s103
      %p112 = scmp.eq.s32.totalorder %s24, 0
      %p113 = por %p111, %p112
      %p114 = scmp.ne.s32.totalorder %s102, %s103
      %p115 = scmp.eq.s32.totalorder %s25, 1
      %p116 = por %p114, %p115
      %p118 = scmp.ne.s32.totalorder %s103, %s117
      %p119 = scmp.eq.s32.totalorder %s25, 0
      %p120 = por %p118, %p119
      %s122 = sadd.s32 %s121, 1
      %p125 = scmp.eq.s32.totalorder %s19, 1
      %p126 = scmp.ne.s32.totalorder %s121, %s123
      %p127 = scmp.eq.s32.totalorder %s19, 0
      %p128 = por %p126, %p127
      %p129 = scmp.ne.s32.totalorder %s121, %s123
      %p130 = scmp.eq.s32.totalorder %s24, 1
      %p131 = por %p129, %p130
      %p132 = scmp.ne.s32.totalorder %s123, %s124
      %p133 = scmp.eq.s32.totalorder %s24, 0
      %p134 = por %p132, %p133
      %p135 = scmp.ne.s32.totalorder %s123, %s124
      %p136 = scmp.eq.s32.totalorder %s25, 1
      %p137 = por %p135, %p136
      %p139 = scmp.ne.s32.totalorder %s124, %s138
      %p140 = scmp.eq.s32.totalorder %s25, 0
      %p141 = por %p139, %p140
      %s143 = sadd.s32 %s142, 1
      %p146 = scmp.eq.s32.totalorder %s19, 1
      %p147 = scmp.ne.s32.totalorder %s142, %s144
      %p148 = scmp.eq.s32.totalorder %s19, 0
      %p149 = por %p147, %p148
      %p150 = scmp.ne.s32.totalorder %s142, %s144
      %p151 = scmp.eq.s32.totalorder %s24, 1
      %p152 = por %p150, %p151
      %p153 = scmp.ne.s32.totalorder %s144, %s145
      %p154 = scmp.eq.s32.totalorder %s24, 0
      %p155 = por %p153, %p154
      %p156 = scmp.ne.s32.totalorder %s144, %s145
      %p157 = scmp.eq.s32.totalorder %s25, 1
      %p158 = por %p156, %p157
      %p160 = scmp.ne.s32.totalorder %s145, %s159
      %p161 = scmp.eq.s32.totalorder %s25, 0
      %p162 = por %p160, %p161
      %s163 = ssub.s32 %s19, %s26
      %p164 = scmp.eq.s32.totalorder %s163, 0
      %s166 = sadd.s32 %s165, 1
      %s167 = scalar_select %p164, %s165, %s166
      %p170 = pneg %p164
      %p171 = scmp.eq.s32.totalorder %s19, 1
      %p172 = por %p170, %p171
      %p173 = scmp.ne.s32.totalorder %s165, %s168
      %p174 = scmp.eq.s32.totalorder %s19, 0
      %p175 = por %p173, %p174
      %p176 = scmp.ne.s32.totalorder %s165, %s168
      %p177 = scmp.eq.s32.totalorder %s24, 1
      %p178 = por %p176, %p177
      %p179 = scmp.ne.s32.totalorder %s168, %s169
      %p180 = scmp.eq.s32.totalorder %s24, 0
      %p181 = por %p179, %p180
      %p182 = scmp.ne.s32.totalorder %s168, %s169
      %p183 = scmp.eq.s32.totalorder %s25, 1
      %p184 = por %p182, %p183
      %p186 = scmp.ne.s32.totalorder %s169, %s185
      %p187 = scmp.eq.s32.totalorder %s25, 0
      %p188 = por %p186, %p187
      %p189 = scmp.le.s32.totalorder 1, %s19
      %p190 = scmp.lt.s32.totalorder %s19, 3
      %p191 = pnand %p189, %p190
      %p192 = pneg %p191
      // Predicated region
      $region9: #{tpu_custom_call.1} parent=5 // pred_check
        _
      $region10: #{tpu_custom_call.1} parent=5 // pred_check_branch
        %194 = sbr.rel (%p191) target = $region12
      $region11: #{tpu_custom_call.1} parent=5 // pred_region
        %s195 = ssub.s32 %s19, 1
        // Predicated region
        $region13: #{tpu_custom_call.1} parent=11 // pred_check
          %p196 = pneg %p92
        $region14: #{tpu_custom_call.1} parent=11 // pred_check_branch
          %198 = sbr.rel (%p196) target = $region16
        $region15: #{tpu_custom_call.1} parent=11 // pred_region
          %s200 = ssub.s32 512, 512
          %201 = vsyncadd [#allocation6], %s200
          %s202 = sshll.u32 [#allocation5], 4
          %s203 = int_to_ptr.vmem [resolvable:$true] %s202
          %208 = dma.hbm_to_vmem [thread:$0]  %s2, 512, %s203, [#allocation6], 128, 128, 8
        $region16: #{tpu_custom_call.1} parent=11 // pred_fallthru
          _
        // Predicated region
        $region17: #{tpu_custom_call.1} parent=11 // pred_check
          %p209 = pneg %p113
        $region18: #{tpu_custom_call.1} parent=11 // pred_check_branch
          %211 = sbr.rel (%p209) target = $region20
        $region19: #{tpu_custom_call.1} parent=11 // pred_region
          %s213 = ssub.s32 512, 512
          %214 = vsyncadd [#allocation6], %s213
          %s215 = sshll.u32 [#allocation7], 4
          %s216 = int_to_ptr.vmem [resolvable:$true] %s215
          %221 = dma.hbm_to_vmem [thread:$0]  %s3, 512, %s216, [#allocation6], 128, 128, 8
        $region20: #{tpu_custom_call.1} parent=11 // pred_fallthru
          _
        // Predicated region
        $region21: #{tpu_custom_call.1} parent=11 // pred_check
          %p222 = pneg %p134
        $region22: #{tpu_custom_call.1} parent=11 // pred_check_branch
          %224 = sbr.rel (%p222) target = $region24
        $region23: #{tpu_custom_call.1} parent=11 // pred_region
          _
        $region24: #{tpu_custom_call.1} parent=11 // pred_fallthru
          _
        // Predicated region
        $region25: #{tpu_custom_call.1} parent=11 // pred_check
          %p225 = pneg %p155
        $region26: #{tpu_custom_call.1} parent=11 // pred_check_branch
          %227 = sbr.rel (%p225) target = $region28
        $region27: #{tpu_custom_call.1} parent=11 // pred_region
          _
        $region28: #{tpu_custom_call.1} parent=11 // pred_fallthru
          _
      $region12: #{tpu_custom_call.1} parent=5 // pred_fallthru
        _
      %p228 = scmp.lt.s32.totalorder %s19, 2
      // Predicated region
      $region29: #{tpu_custom_call.1} parent=5 // pred_check
        %p229 = pneg %p228
      $region30: #{tpu_custom_call.1} parent=5 // pred_check_branch
        %231 = sbr.rel (%p229) target = $region32
      $region31: #{tpu_custom_call.1} parent=5 // pred_region
        // Predicated region
        $region33: #{tpu_custom_call.1} parent=31 // pred_check
          %p232 = pneg %p39
        $region34: #{tpu_custom_call.1} parent=31 // pred_check_branch
          %234 = sbr.rel (%p232) target = $region36
        $region35: #{tpu_custom_call.1} parent=31 // pred_region
          %s235 = sand.u32 %s29, 1
          %s236 = scalar_lea.sflag [#allocation3], %s235
          %s237 = sand.u32 %s29, 1
          %s238 = smul.addr %s237, 8
          %s239 = scalar_lea.vmem [#allocation2], %s238
          %s241 = ssub.s32 128, 128
          %242 = vsyncadd %s236, %s241
          %s243 = smul.addr %s19, 128
          %s244 = scalar_lea.hbm %s0, %s243
          %s246 = sshll.u32 %s239, 4
          %s247 = int_to_ptr.vmem [resolvable:$true] %s246
          %249 = dma.hbm_to_vmem [thread:$0]  %s244, 128, %s247, %s236
        $region36: #{tpu_custom_call.1} parent=31 // pred_fallthru
          _
        // Predicated region
        $region37: #{tpu_custom_call.1} parent=31 // pred_check
          %p250 = pneg %p65
        $region38: #{tpu_custom_call.1} parent=31 // pred_check_branch
          %252 = sbr.rel (%p250) target = $region40
        $region39: #{tpu_custom_call.1} parent=31 // pred_region
          %p253 = scmp.lt.s32.totalorder %s19, 1
          %s254 = scalar_select %p253, %s19, 1
          %s255 = scalar_lea.vmem %s1, %s254
        $region40: #{tpu_custom_call.1} parent=31 // pred_fallthru
          _
      $region32: #{tpu_custom_call.1} parent=5 // pred_fallthru
        _
      %p256 = scmp.le.s32.totalorder 1, %s19
      %p257 = scmp.lt.s32.totalorder %s19, 3
      %p258 = pnand %p256, %p257
      %p259 = pneg %p258
      // Predicated region
      $region41: #{tpu_custom_call.1} parent=5 // pred_check
        _
      $region42: #{tpu_custom_call.1} parent=5 // pred_check_branch
        %261 = sbr.rel (%p258) target = $region44
      $region43: #{tpu_custom_call.1} parent=5 // pred_region
        %s262 = ssub.s32 %s19, 1
        %s263 = sand.u32 %s32, 1
        %s264 = scalar_lea.sflag [#allocation3], %s263
        %s265 = sand.u32 %s32, 1
        %s266 = smul.addr %s265, 8
        %s267 = scalar_lea.vmem [#allocation2], %s266
        // Predicated region
        $region45: #{tpu_custom_call.1} parent=43 // pred_check
          %p268 = pneg %p45
        $region46: #{tpu_custom_call.1} parent=43 // pred_check_branch
          %270 = sbr.rel (%p268) target = $region48
        $region47: #{tpu_custom_call.1} parent=43 // pred_region
          %271 = dma.done %s264, 128
        $region48: #{tpu_custom_call.1} parent=43 // pred_fallthru
          _
        // Predicated region
        $region49: #{tpu_custom_call.1} parent=43 // pred_check
          %p272 = pneg %p92
        $region50: #{tpu_custom_call.1} parent=43 // pred_check_branch
          %274 = sbr.rel (%p272) target = $region52
        $region51: #{tpu_custom_call.1} parent=43 // pred_region
          %275 = dma.done [#allocation6], 512
        $region52: #{tpu_custom_call.1} parent=43 // pred_fallthru
          _
        // Predicated region
        $region53: #{tpu_custom_call.1} parent=43 // pred_check
          %p276 = pneg %p113
        $region54: #{tpu_custom_call.1} parent=43 // pred_check_branch
          %278 = sbr.rel (%p276) target = $region56
        $region55: #{tpu_custom_call.1} parent=43 // pred_region
          %279 = dma.done [#allocation6], 512
        $region56: #{tpu_custom_call.1} parent=43 // pred_fallthru
          _
        %s280 = sand.u32 %s32, 1
        %s281 = scalar_lea.sflag [#allocation3], %s280
        %s282 = sand.u32 %s32, 1
        %s283 = smul.addr %s282, 8
        %s284 = scalar_lea.vmem [#allocation2], %s283
        %p285 = pneg %p45
        %p286 = pneg %p42
        %p287 = scmp.lt.s32.totalorder %s24, 1
        %s288 = scalar_select %p287, %s24, 1
        %s289 = scalar_lea.vmem %s1, %s288
        %p290 = pneg %p71
        %p291 = pneg %p68
        %p292 = pneg %p92
        %p293 = pneg %p89
        %p294 = pneg %p113
        %p295 = pneg %p110
        %p296 = pneg %p134
        %p297 = pneg %p131
        %p298 = pneg %p155
        %p299 = pneg %p152
        %p300 = pneg %p181
        %p301 = pneg %p178
        %s302 = sand.u32 %s168, 1
        %s303 = scalar_lea.sflag [#allocation4], %s302
        %s304 = sand.u32 %s168, 1
        %s305 = scalar_lea.vmem [#allocation8], %s304
        %p306 = scmp.lt.s32.totalorder %s24, 1
        %s307 = scalar_select %p306, %s24, 1
        %s308 = scalar_lea.vmem %s1, %s307
        %v309 = vld [vmem:[%s267] sm:$0xff]
        %v310 = vld [vmem:[%s308] sm:$0x1]
        %v311 = vld [vmem:[#allocation5] sm:$0xff]
        %v312 = vld [vmem:[#allocation5 + $0x8] sm:$0xff]
        %v313 = vld [vmem:[#allocation5 + $0x10] sm:$0xff]
        %v314 = vld [vmem:[#allocation5 + $0x18] sm:$0xff]
        %v315 = vld [vmem:[#allocation7] sm:$0xff]
        %v316 = vld [vmem:[#allocation7 + $0x8] sm:$0xff]
        %v317 = vld [vmem:[#allocation7 + $0x10] sm:$0xff]
        %v318 = vld [vmem:[#allocation7 + $0x18] sm:$0xff]
        %vm319 = vcmask 261120
        %v321 = vsel %vm319, %v310, 0
        %323 = vmatprep.subr.mxu0 0.0
        %324 = vmatpush1.msra.mxu0 %v315
        %325 = vmatprep.subr.mxu0 0.0
        %326 = vmatpush1.msra.mxu0 %v316
        %327 = vmatprep.subr.mxu0 0.0
        %328 = vmatpush1.msra.mxu0 %v317
        %329 = vmatprep.subr.mxu0 0.0
        %330 = vmatpush1.msra.mxu0 %v318
        %331 = vmatprep.subr.mxu0 0.0
        %332 = vmatpush1.msra.mxu0 0.0
        %333 = vmatprep.subr.mxu0 0.0
        %334 = vmatpush1.msra.mxu0 0.0
        %335 = vmatprep.subr.mxu0 0.0
        %336 = vmatpush1.msra.mxu0 0.0
        %337 = vmatprep.subr.mxu0 0.0
        %338 = vmatpush1.msra.mxu0 0.0
        %339 = vmatprep.subr.mxu0 0.0
        %340 = vmatpush1.msra.mxu0 0.0
        %341 = vmatprep.subr.mxu0 0.0
        %342 = vmatpush1.msra.mxu0 0.0
        %343 = vmatprep.subr.mxu0 0.0
        %344 = vmatpush1.msra.mxu0 0.0
        %345 = vmatprep.subr.mxu0 0.0
        %346 = vmatpush1.msra.mxu0 0.0
        %347 = vmatprep.subr.mxu0 0.0
        %348 = vmatpush1.msra.mxu0 0.0
        %349 = vmatprep.subr.mxu0 0.0
        %350 = vmatpush1.msra.mxu0 0.0
        %351 = vmatprep.subr.mxu0 0.0
        %352 = vmatpush1.msra.mxu0 0.0
        %353 = vmatprep.subr.mxu0 0.0
        %354 = vmatpush1.msra.mxu0 0.0
        %355 = vmatprep.subr.mxu0 0.0
        %356 = vmatpush1.msra.mxu0 0.0
        %357 = vmatprep.subr.mxu0 0.0
        %358 = vmatpush1.msra.mxu0 0.0
        %359 = vmatprep.subr.mxu0 0.0
        %360 = vmatpush1.msra.mxu0 0.0
        %361 = vmatprep.subr.mxu0 0.0
        %362 = vmatpush1.msra.mxu0 0.0
        %363 = vmatprep.subr.mxu0 0.0
        %364 = vmatpush1.msra.mxu0 0.0
        %365 = vmatprep.subr.mxu0 0.0
        %366 = vmatpush1.msra.mxu0 0.0
        %367 = vmatprep.subr.mxu0 0.0
        %368 = vmatpush1.msra.mxu0 0.0
        %369 = vmatprep.subr.mxu0 0.0
        %370 = vmatpush1.msra.mxu0 0.0
        %371 = vmatprep.subr.mxu0 0.0
        %372 = vmatpush1.msra.mxu0 0.0
        %373 = vmatprep.subr.mxu0 0.0
        %374 = vmatpush1.msra.mxu0 0.0
        %375 = vmatprep.subr.mxu0 0.0
        %376 = vmatpush1.msra.mxu0 0.0
        %377 = vmatprep.subr.mxu0 0.0
        %378 = vmatpush1.msra.mxu0 0.0
        %379 = vmatprep.subr.mxu0 0.0
        %380 = vmatpush1.msra.mxu0 0.0
        %381 = vmatprep.subr.mxu0 0.0
        %382 = vmatpush1.msra.mxu0 0.0
        %383 = vmatprep.subr.mxu0 0.0
        %384 = vmatpush1.msra.mxu0 0.0
        %385 = vmatprep.subr.mxu0 0.0
        %386 = vmatpush1.msra.mxu0 0.0
        %387 = vmatprep.mubr.f32.mxu0 0.0
        %388 = vmatmul.mubr.f32.gmra.mrb[0].mxu0 %v321
        %v389 = vpop.f32.mrb[0].mxu0
        %v390 = vadd.f32 0.0, %v389
        %v391 = vpop.f32.mrb[0].mxu0
        %392 = vdwg.mxu0
        %v393 = vlaneseq
        %v394 = vshrl.u32 %v393, 7
        %v395 = vsub.s32 0, %v394
        %v396 = vrot.slane %v390, %v395
        %v398 = vsel %vm319, %v309, 0
        %400 = vmatprep.subr.mxu0 0.0
        %401 = vmatpush1.msra.mxu0 %v311
        %402 = vmatprep.subr.mxu0 0.0
        %403 = vmatpush1.msra.mxu0 %v312
        %404 = vmatprep.subr.mxu0 0.0
        %405 = vmatpush1.msra.mxu0 %v313
        %406 = vmatprep.subr.mxu0 0.0
        %407 = vmatpush1.msra.mxu0 %v314
        %408 = vmatprep.subr.mxu0 0.0
        %409 = vmatpush1.msra.mxu0 0.0
        %410 = vmatprep.subr.mxu0 0.0
        %411 = vmatpush1.msra.mxu0 0.0
        %412 = vmatprep.subr.mxu0 0.0
        %413 = vmatpush1.msra.mxu0 0.0
        %414 = vmatprep.subr.mxu0 0.0
        %415 = vmatpush1.msra.mxu0 0.0
        %416 = vmatprep.subr.mxu0 0.0
        %417 = vmatpush1.msra.mxu0 0.0
        %418 = vmatprep.subr.mxu0 0.0
        %419 = vmatpush1.msra.mxu0 0.0
        %420 = vmatprep.subr.mxu0 0.0
        %421 = vmatpush1.msra.mxu0 0.0
        %422 = vmatprep.subr.mxu0 0.0
        %423 = vmatpush1.msra.mxu0 0.0
        %424 = vmatprep.subr.mxu0 0.0
        %425 = vmatpush1.msra.mxu0 0.0
        %426 = vmatprep.subr.mxu0 0.0
        %427 = vmatpush1.msra.mxu0 0.0
        %428 = vmatprep.subr.mxu0 0.0
        %429 = vmatpush1.msra.mxu0 0.0
        %430 = vmatprep.subr.mxu0 0.0
        %431 = vmatpush1.msra.mxu0 0.0
        %432 = vmatprep.subr.mxu0 0.0
        %433 = vmatpush1.msra.mxu0 0.0
        %434 = vmatprep.subr.mxu0 0.0
        %435 = vmatpush1.msra.mxu0 0.0
        %436 = vmatprep.subr.mxu0 0.0
        %437 = vmatpush1.msra.mxu0 0.0
        %438 = vmatprep.subr.mxu0 0.0
        %439 = vmatpush1.msra.mxu0 0.0
        %440 = vmatprep.subr.mxu0 0.0
        %441 = vmatpush1.msra.mxu0 0.0
        %442 = vmatprep.subr.mxu0 0.0
        %443 = vmatpush1.msra.mxu0 0.0
        %444 = vmatprep.subr.mxu0 0.0
        %445 = vmatpush1.msra.mxu0 0.0
        %446 = vmatprep.subr.mxu0 0.0
        %447 = vmatpush1.msra.mxu0 0.0
        %448 = vmatprep.subr.mxu0 0.0
        %449 = vmatpush1.msra.mxu0 0.0
        %450 = vmatprep.subr.mxu0 0.0
        %451 = vmatpush1.msra.mxu0 0.0
        %452 = vmatprep.subr.mxu0 0.0
        %453 = vmatpush1.msra.mxu0 0.0
        %454 = vmatprep.subr.mxu0 0.0
        %455 = vmatpush1.msra.mxu0 0.0
        %456 = vmatprep.subr.mxu0 0.0
        %457 = vmatpush1.msra.mxu0 0.0
        %458 = vmatprep.subr.mxu0 0.0
        %459 = vmatpush1.msra.mxu0 0.0
        %460 = vmatprep.subr.mxu0 0.0
        %461 = vmatpush1.msra.mxu0 0.0
        %462 = vmatprep.subr.mxu0 0.0
        %463 = vmatpush1.msra.mxu0 0.0
        %464 = vmatprep.mubr.f32.mxu0 0.0
        %465 = vmatmul.mubr.f32.gmra.mrb[0].mxu0 %v398
        %v466 = vpop.f32.mrb[0].mxu0
        %v467 = vadd.f32 %v396, %v466
        %v468 = vpop.f32.mrb[0].mxu0
        %469 = vdwg.mxu0
        %v470 = vld [vmem:[%s4] sm:$0x1]
        %v472 = vlaneseq
        %v473 = vshrl.u32 %v472, 7
        %v474 = vsub.s32 0, %v473
        %v475 = vrot.slane %v470, %v474
        %v477 = vadd.f32 %v467, %v475
        %v478 = vtanh.pop %v477
        %v479 = vld [vmem:[%s5] sm:$0x1]
        %v481 = vlaneseq
        %v482 = vshrl.u32 %v481, 7
        %v483 = vsub.s32 0, %v482
        %v484 = vrot.slane %v479, %v483
        %v486 = vmul.f32 %v478, %v484
        %v487 = vsel %vm319, %v486, 0.0
        %488 = vadd.xlane.f32.xlu0 %v487
        %v489 = vpop.xlane.xlu0 %488
        %v490 = vrot.slane %v489, 4
        %v491 = vmax.f32 %v489, %v490
        %v492 = vrot.slane %v491, 2
        %v493 = vmax.f32 %v491, %v492
        %v494 = vrot.slane %v493, 1
        %v495 = vmax.f32 %v493, %v494
        %v496 = vsub.f32 %v489, %v495
        %v497 = vmul.f32 %v496, 1.442695
        %v498 = vpow.pop %v497
        %v499 = vrot.slane %v498, 4
        %v500 = vadd.f32 %v498, %v499
        %v501 = vrot.slane %v500, 2
        %v502 = vadd.f32 %v500, %v501
        %v503 = vrot.slane %v502, 1
        %v504 = vadd.f32 %v502, %v503
        %v505 = vrcp.pop %v504
        %v506 = vmul.f32 %v498, %v505
        %v507 = vmul.f32 %v506, %v309
        %v508 = vsel %vm319, %v507, 0.0
        %v509 = vrot.slane %v508, 4
        %v510 = vadd.f32 %v508, %v509
        %v511 = vrot.slane %v510, 2
        %v512 = vadd.f32 %v510, %v511
        %v513 = vrot.slane %v512, 1
        %v514 = vadd.f32 %v512, %v513
        %vm515 = vcmask 253952
        %516 = vst.msk [vmem:[%s305] sm:$0x1] %vm515, %v514
        %s517 = sand.u32 %s168, 1
        %s518 = scalar_lea.sflag [#allocation4], %s517
        %s519 = sand.u32 %s168, 1
        %s520 = scalar_lea.vmem [#allocation8], %s519
        // Predicated region
        $region57: #{tpu_custom_call.1} parent=43 // pred_check
          %p521 = pneg %p178
        $region58: #{tpu_custom_call.1} parent=43 // pred_check_branch
          %523 = sbr.rel (%p521) target = $region60
        $region59: #{tpu_custom_call.1} parent=43 // pred_region
          %s525 = ssub.s32 16, 16
          %526 = vsyncadd %s518, %s525
          %s527 = smul.addr %s24, 16
          %s528 = scalar_lea.hbm %s6, %s527
          %s530 = sshll.u32 %s520, 4
          %s531 = int_to_ptr.vmem [resolvable:$true] %s530
          %533 = dma.vmem_to_hbm [thread:$0]  %s531, 16, %s528, %s518
        $region60: #{tpu_custom_call.1} parent=43 // pred_fallthru
          _
      $region44: #{tpu_custom_call.1} parent=5 // pred_fallthru
        _
      %p534 = scmp.le.s32.totalorder 2, %s19
      // Predicated region
      $region61: #{tpu_custom_call.1} parent=5 // pred_check
        %p535 = pneg %p534
      $region62: #{tpu_custom_call.1} parent=5 // pred_check_branch
        %537 = sbr.rel (%p535) target = $region64
      $region63: #{tpu_custom_call.1} parent=5 // pred_region
        %s538 = ssub.s32 %s19, 2
        // Predicated region
        $region65: #{tpu_custom_call.1} parent=63 // pred_check
          %p539 = pneg %p184
        $region66: #{tpu_custom_call.1} parent=63 // pred_check_branch
          %541 = sbr.rel (%p539) target = $region68
        $region67: #{tpu_custom_call.1} parent=63 // pred_region
          %s542 = sand.u32 %s169, 1
          %s543 = scalar_lea.sflag [#allocation4], %s542
          %s544 = sand.u32 %s169, 1
          %s545 = scalar_lea.vmem [#allocation8], %s544
          %546 = dma.done %s543, 16
        $region68: #{tpu_custom_call.1} parent=63 // pred_fallthru
          _
      $region64: #{tpu_custom_call.1} parent=5 // pred_fallthru
        _
    $region6: #{tpu_custom_call.1} parent=1 // loop_footer
      %s23 = sadd.s32 1, %s19
    $region7: #{tpu_custom_call.1} parent=1 // loop_footer_branch
      %18 = sbr.rel target = $region3
    $region8: #{tpu_custom_call.1} parent=1 // loop_exit
      _
    %547 = vsyncpa [#allocation3], 1
    %s548 = scalar_lea.sflag [#allocation3], 1
    %549 = vsyncpa %s548, 1
    %550 = vsyncpa [#allocation6], 1
    %551 = vsyncpa [#allocation4], 1
    %s552 = scalar_lea.sflag [#allocation4], 1
    %553 = vsyncpa %s552, 1

</llo_original>
